<compile_context>
chip_gen: v6e
topology: v6e:2x2x1
jax: 0.10.0
libtpu: 0.0.40
codegen_flags: <defaults>
</compile_context>

<pallas_src>
import functools

import jax
import jax.numpy as jnp
from jax import lax
from jax.experimental import pallas as pl
from jax.experimental.pallas import tpu as pltpu


_TILE_R_CAP = 256     # rows per block (multiple of 8)
_TILE_L_CAP = 4096    # lanes per block (multiple of 128) -> 4 MiB f32 block


def _round_up(a, b):
    return ((a + b - 1) // b) * b


def _rowmax_kernel(x_ref, o_ref, *, valid_l, tile_l, fill):
    """Running per-row max with deferred cross-lane reduction.

    x_ref: (tile_r, tile_l) input tile.
    o_ref: (tile_r, 128) resident partial-max output (accumulator across the
           L grid axis); the final 128-lane reduce happens outside the kernel.
    Grid = (row_tiles, l_tiles); axis 1 (L) is the reduction axis (last).
    """
    j = pl.program_id(1)

    @pl.when(j == 0)
    def _():
        o_ref[...] = jnp.full(o_ref.shape, fill, o_ref.dtype)

    x = x_ref[...]
    if valid_l % tile_l != 0:
        # Mask out-of-range lanes of the (partially OOB) tail tile in-kernel
        # instead of materializing a padded HBM copy. All-true for full tiles;
        # the extra VPU compare/select is free filler in a mem-bound kernel.
        col = j * tile_l + lax.broadcasted_iota(jnp.int32, x.shape, 1)
        x = jnp.where(col < valid_l, x, fill)

    # Pure VPU elementwise max over 128-lane groups (no XLU reduce per step).
    acc = x[:, 0:128]
    for k in range(1, tile_l // 128):
        acc = jnp.maximum(acc, x[:, k * 128:(k + 1) * 128])
    o_ref[...] = jnp.maximum(o_ref[...], acc)


def _per_row_partial_max(x_rl):
    """x_rl: (R, L). Returns (R, 128) per-row partial maxes (lane reduce done outside)."""
    R, L = x_rl.shape
    dtype = x_rl.dtype
    if jnp.issubdtype(dtype, jnp.floating):
        fill = float("-inf")
    else:
        fill = int(jnp.iinfo(dtype).min)

    tile_r = min(_TILE_R_CAP, _round_up(R, 8))      # multiple of 8
    tile_l = min(_TILE_L_CAP, _round_up(L, 128))    # multiple of 128
    grid = (pl.cdiv(R, tile_r), pl.cdiv(L, tile_l))

    kernel = functools.partial(_rowmax_kernel, valid_l=L, tile_l=tile_l, fill=fill)
    itemsize = jnp.dtype(dtype).itemsize
    cost = pl.CostEstimate(
        flops=R * L,
        transcendentals=0,
        bytes_accessed=R * L * itemsize + R * 128 * itemsize,
    )

    return pl.pallas_call(
        kernel,
        out_shape=jax.ShapeDtypeStruct((R, 128), dtype),
        grid_spec=pltpu.PrefetchScalarGridSpec(
            num_scalar_prefetch=0,
            grid=grid,
            in_specs=[pl.BlockSpec((tile_r, tile_l), lambda i, j: (i, j))],
            out_specs=pl.BlockSpec((tile_r, 128), lambda i, j: (i, 0)),
        ),
        compiler_params=pltpu.CompilerParams(
            dimension_semantics=("parallel", "arbitrary"),
            vmem_limit_bytes=32 * 1024 * 1024,
        ),
        cost_estimate=cost,
    )(x_rl)


def _amax_keepdim(x, level):
    """amax over 'layer'/'channel' dims with keepdim, via the Pallas row-max kernel."""
    N, C, H, W = x.shape
    if level in ("layer", "channel"):
        # Free reshape of the contiguous NCHW array (no materialized transpose).
        x2d = x.reshape(N * C, H * W)
        partial = _per_row_partial_max(x2d)                        # (N*C, 128)
        ch_max = jnp.max(partial.reshape(N, C, 128), axis=(0, 2))  # (C,)
        if level == "layer":
            return jnp.max(ch_max).reshape(1, 1, 1, 1)
        return ch_max.reshape(1, C, 1, 1)
    # level == 'neuron' (dims=[0]) reduces only over batch; not the hot path.
    # TODO(synk): dedicated Pallas kernel for 'neuron'-level reduction.
    return jnp.max(x, axis=0, keepdims=True)


@functools.partial(jax.jit, static_argnames=("level",))
def _thre_update(x, prev_scale, m, level):
    """Fused per-call compute: amax + EMA momentum update, one dispatch."""
    s_t = _amax_keepdim(x, level)
    return (1.0 - m) * prev_scale + m * s_t


class ThreHookPallas:
    """JAX/Pallas port of ThreHook with mode='Max', out_layer=Identity."""

    def __init__(self, scale=1.0, mode="Max", momentum=0.1,
                 out_layer="Identity", level="layer"):
        assert mode.lower() == "max", "only mode='Max' is implemented"
        self.mode = mode
        self.momentum = momentum
        self.level = level
        self.scale = None                 # buffer, (1,1,1,1) / (1,C,1,1) / (1,C,H,W)
        self.num_batches_tracked = 0      # buffer
        # out_layer is Identity in this config -> pure pass-through.

    def _scale_shape(self, x):
        N, C, H, W = x.shape
        if self.level == "layer":
            return (1, 1, 1, 1)
        if self.level == "channel":
            return (1, C, 1, 1)
        return (1, C, H, W)  # neuron

    def __call__(self, x):
        B = x.shape[0]
        if self.scale is None:
            # m=1 with zero prev -> scale = s_t (matches first-batch behavior).
            m_val = 1.0
            prev = jnp.zeros(self._scale_shape(x), dtype=x.dtype)
        else:
            m_val = B / (self.num_batches_tracked + B)
            self.momentum = m_val
            prev = self.scale
        m = jnp.asarray(m_val, dtype=x.dtype)   # array arg -> no recompile per value
        self.scale = _thre_update(x, prev, m, self.level)
        self.num_batches_tracked += B
        return x


if __name__ == "__main__":
    key = jax.random.PRNGKey(0)
    k1, k2, k3 = jax.random.split(key, 3)
    # Small NCHW inputs: batch=2, channels=4, spatial=16x16.
    x1 = jax.random.normal(k1, (2, 4, 16, 16), dtype=jnp.float32)
    x2 = jax.random.normal(k2, (2, 4, 16, 16), dtype=jnp.float32)

    # layer-level hook (default config path)
    hook_layer = ThreHookPallas(mode="Max", level="layer")
    y1 = hook_layer(x1)
    y2 = hook_layer(x2)   # exercises the momentum-update branch
    jax.block_until_ready((y1, y2, hook_layer.scale))

    # channel-level hook (per-channel threshold)
    hook_ch = ThreHookPallas(mode="Max", level="channel")
    z1 = hook_ch(x1)
    jax.block_until_ready((z1, hook_ch.scale))

    # Sanity checks vs. plain-JAX reference.
    ref_s1 = jnp.max(x1).reshape(1, 1, 1, 1)
    m = 2 / (2 + 2)
    ref_scale_layer = (1 - m) * ref_s1 + m * jnp.max(x2).reshape(1, 1, 1, 1)
    assert jnp.allclose(hook_layer.scale, ref_scale_layer, atol=1e-6), "layer scale mismatch"
    ref_scale_ch = jnp.max(x1, axis=(0, 2, 3), keepdims=True)
    assert jnp.allclose(hook_ch.scale, ref_scale_ch, atol=1e-6), "channel scale mismatch"
    assert jnp.array_equal(y1, x1) and jnp.array_equal(z1, x1), "identity pass-through broken"

    # Odd, non-(8,128)-aligned shape: exercises in-kernel tail-lane masking and
    # partial row blocks (no HBM pad anywhere).
    x3 = jax.random.normal(k3, (2, 3, 7, 9), dtype=jnp.float32)
    hook_odd = ThreHookPallas(mode="Max", level="channel")
    w3 = hook_odd(x3)
    jax.block_until_ready((w3, hook_odd.scale))
    ref_odd = jnp.max(x3, axis=(0, 2, 3), keepdims=True)
    assert jnp.allclose(hook_odd.scale, ref_odd, atol=1e-6), "odd-shape channel scale mismatch"

    print("KERNEL_OK")
</pallas_src>

<mosaic_0001>
module attributes {stable_mosaic.version = 11 : i64} {
  func.func @_rowmax_kernel(%arg0: i32, %arg1: i32, %arg2: memref<8x256xf32, #tpu.memory_space<vmem>>, %arg3: memref<8x128xf32, #tpu.memory_space<vmem>>) attributes {dimension_semantics = [#tpu.dimension_semantics<parallel>, #tpu.dimension_semantics<arbitrary>], iteration_bounds = array<i64: 1, 1>, scalar_prefetch = 0 : i64, scratch_operands = 0 : i64, tpu.core_type = #tpu.core_type<tc>, window_params = [{transform_indices = @transform_0, window_bounds = array<i64: 8, 256>}, {transform_indices = @transform_1, window_bounds = array<i64: 8, 128>}]} {
    %c0_i32 = arith.constant 0 : i32
    %0 = arith.cmpi eq, %arg1, %c0_i32 : i32
    %1 = arith.extui %0 : i1 to i32
    %c0_i32_0 = arith.constant 0 : i32
    %2 = arith.cmpi ne, %1, %c0_i32_0 : i32
    scf.if %2 {
      %cst = arith.constant 0xFF800000 : f32
      %10 = vector.broadcast %cst : f32 to vector<8x128xf32>
      %c0_6 = arith.constant 0 : index
      %c0_7 = arith.constant 0 : index
      %11 = vector.load %arg3[%c0_6, %c0_7] : memref<8x128xf32, #tpu.memory_space<vmem>>, vector<8x128xf32>
      tpu.vector_store %arg3[%c0_6, %c0_7], %10 {strides = array<i32>} : memref<8x128xf32, #tpu.memory_space<vmem>>, vector<8x128xf32>,
    } else {
    }
    %c0 = arith.constant 0 : index
    %c0_1 = arith.constant 0 : index
    %3 = vector.load %arg2[%c0, %c0_1] : memref<8x256xf32, #tpu.memory_space<vmem>>, vector<8x256xf32>
    %4 = vector.extract_strided_slice %3 {offsets = [0, 0], sizes = [8, 128], strides = [1, 1]} : vector<8x256xf32> to vector<8x128xf32>
    %5 = vector.extract_strided_slice %3 {offsets = [0, 128], sizes = [8, 128], strides = [1, 1]} : vector<8x256xf32> to vector<8x128xf32>
    %6 = arith.maximumf %4, %5 : vector<8x128xf32>
    %c0_2 = arith.constant 0 : index
    %c0_3 = arith.constant 0 : index
    %7 = vector.load %arg3[%c0_2, %c0_3] : memref<8x128xf32, #tpu.memory_space<vmem>>, vector<8x128xf32>
    %8 = arith.maximumf %7, %6 : vector<8x128xf32>
    %c0_4 = arith.constant 0 : index
    %c0_5 = arith.constant 0 : index
    %9 = vector.load %arg3[%c0_4, %c0_5] : memref<8x128xf32, #tpu.memory_space<vmem>>, vector<8x128xf32>
    tpu.vector_store %arg3[%c0_4, %c0_5], %8 {strides = array<i32>} : memref<8x128xf32, #tpu.memory_space<vmem>>, vector<8x128xf32>,
    return
  }
  func.func @transform_0(%arg0: i32, %arg1: i32) -> (i32, i32) {
    %c0_i32 = arith.constant 0 : i32
    return %arg0, %arg1 : i32, i32
  }
  func.func @transform_1(%arg0: i32, %arg1: i32) -> (i32, i32) {
    %c0_i32 = arith.constant 0 : i32
    %c0_i32_0 = arith.constant 0 : i32
    return %arg0, %c0_i32 : i32, i32
  }
}

</mosaic_0001>

<llo_original>
// kernel: _thre_update.1
$region0: #{_thre_update.1}
  #allocation0 [shape = 'u32[]', space=smem, size = 0x4, offset = 0x4, fixed_abs, tag = 'smem constant byte address 0x4 - core index']
  #allocation1 [shape = 'u32[144,128]{1,0:T(1,128)}', space=vmem, size = 0x12000, scoped, tag = 'internal scratch']
  %s0 = inlined_call_operand.vmem [shape: f32[8,256], index: 0, kind: input, shape index: {}]
  %s1 = inlined_call_operand.vmem [shape: f32[8,128], index: 1, kind: output, shape index: {}]
  %s2 = sld [smem:[#allocation0]]
  $region18: #{_thre_update.1} parent=0
    _
  %s4 = ssub.s32 1, %s2
  %s5 = scalar_select 0, %s4, %s2
  // Predicated region
  $region2: #{_thre_update.1} parent=0 // pred_check
    _
  $region3: #{_thre_update.1} parent=0 // pred_check_branch
    %7 = sbr.rel (0) target = $region5
  $region4: #{_thre_update.1} parent=0 // pred_region
    _
  $region5: #{_thre_update.1} parent=0 // pred_fallthru
    _
  %p8 = scmp.eq.s32.totalorder 0, 0
  // Predicated region
  $region6: #{_thre_update.1} parent=0 // pred_check
    %p9 = pneg %p8
  $region7: #{_thre_update.1} parent=0 // pred_check_branch
    %11 = sbr.rel (%p9) target = $region9
  $region8: #{_thre_update.1} parent=0 // pred_region
    %12 = vst [vmem:[%s1] sm:$0xff] -inf
  $region9: #{_thre_update.1} parent=0 // pred_fallthru
    _
  %v13 = vld [vmem:[%s0] sm:$0xff]
  %v14 = vld [vmem:[%s0 + $0x8] sm:$0xff]
  %v15 = vmax.f32 %v13, %v14
  %v16 = vld [vmem:[%s1] sm:$0xff]
  %v17 = vmax.f32 %v16, %v15
  %18 = vst [vmem:[%s1] sm:$0xff] %v17
  // Predicated region
  $region10: #{_thre_update.1} parent=0 // pred_check
    _
  $region11: #{_thre_update.1} parent=0 // pred_check_branch
    %20 = sbr.rel (0) target = $region13
  $region12: #{_thre_update.1} parent=0 // pred_region
    _
  $region13: #{_thre_update.1} parent=0 // pred_fallthru
    _
  // Predicated region
  $region14: #{_thre_update.1} parent=0 // pred_check
    _
  $region15: #{_thre_update.1} parent=0 // pred_check_branch
    %22 = sbr.rel (0) target = $region17
  $region16: #{_thre_update.1} parent=0 // pred_region
    _
  $region17: #{_thre_update.1} parent=0 // pred_fallthru
    _

</llo_original>
